<compile_context>
chip_gen: v5e
topology: v5e:2x2
jax: 0.10.0
libtpu: 0.0.40
codegen_flags: <defaults>
</compile_context>

<pallas_src>
import math

import jax
import jax.numpy as jnp
from jax.experimental import pallas as pl
from jax.experimental.pallas import tpu as pltpu


# sigmoid(x) > 0.1  <=>  x > log(0.1 / 0.9)
_LOGIT_THRESH = math.log(0.1 / 0.9)


# ---------------------------------------------------------------------------
# Fused kernel: decode + standup + IoU + weighted reduction.
# ---------------------------------------------------------------------------
def _targeted_loss_kernel(count_ref,                       # SMEM (1,) int32 (scalar prefetch)
                          d_ref, a_ref, lg_ref, tgt_ref,   # VMEM tiles
                          tproj_ref,                       # SMEM (8,) f32 (T rows 0,1)
                          out_ref):                        # (1,1,1) per-core accumulator
    c = pl.program_id(0)
    i = pl.program_id(1)
    tile = lg_ref.shape[-1]

    @pl.when(i == 0)
    def _init():
        out_ref[...] = jnp.zeros_like(out_ref)

    d = d_ref[...]            # (8, tile) rows 0..6 = delta  x y z h w l r
    a = a_ref[...]            # (8, tile) rows 0..6 = anchor x y z h w l r
    lg = lg_ref[...]          # (1, tile) cls logits

    # ---- anchor decode (delta_to_boxes3d), all (1, tile) rows ----
    diag = jnp.sqrt(a[4:5] * a[4:5] + a[5:6] * a[5:6])     # sqrt(w^2 + l^2)
    bx = d[0:1] * diag + a[0:1]
    by = d[1:2] * diag + a[1:2]
    bz = d[2:3] * a[3:4] + a[2:3]
    bh = jnp.exp(d[3:4]) * a[3:4]
    bw = jnp.exp(d[4:5]) * a[4:5]
    bl = jnp.exp(d[5:6]) * a[5:6]
    br = d[6:7] + a[6:7]

    # ---- corners -> projection -> standup box, folded analytically ----
    t00 = tproj_ref[0]; t01 = tproj_ref[1]; t02 = tproj_ref[2]; t03 = tproj_ref[3]
    t10 = tproj_ref[4]; t11 = tproj_ref[5]; t12 = tproj_ref[6]; t13 = tproj_ref[7]
    cr = jnp.cos(br)
    sr = jnp.sin(br)
    pxc = t00 * bx + t01 * by + t02 * bz + t03             # projected center x
    pyc = t10 * bx + t11 * by + t12 * bz + t13             # projected center y
    hx = (jnp.abs(t00 * cr + t01 * sr) * bl
          + jnp.abs(t01 * cr - t00 * sr) * bw
          + jnp.abs(t02) * bh) * 0.5                       # half extent in x
    hy = (jnp.abs(t10 * cr + t11 * sr) * bl
          + jnp.abs(t11 * cr - t10 * sr) * bw
          + jnp.abs(t12) * bh) * 0.5                       # half extent in y
    px1 = pxc - hx
    px2 = pxc + hx
    py1 = pyc - hy
    py2 = pyc + hy
    area_p = 4.0 * hx * hy                                 # (1, tile)

    # ---- score gate + log(1 - sigmoid) = -softplus, padded-lane mask ----
    base = (c * pl.num_programs(1) + i) * tile
    lane = jax.lax.broadcasted_iota(jnp.int32, (1, tile), 1) + base
    valid = (lane < count_ref[0]).astype(jnp.float32)
    sel = (lg > _LOGIT_THRESH).astype(jnp.float32)
    softplus = jnp.maximum(lg, 0.0) + jnp.log(1.0 + jnp.exp(-jnp.abs(lg)))
    weight = sel * valid * (-softplus)                     # (1, tile)

    # ---- pairwise IoU: targets on sublanes, anchors on lanes ----
    t = tgt_ref[...]                                       # (K_pad, 8)
    tx1 = t[:, 0:1]
    ty1 = t[:, 1:2]
    tx2 = t[:, 2:3]
    ty2 = t[:, 3:4]
    t_area = t[:, 4:5]
    t_valid = t[:, 5:6]
    iw = jnp.maximum(jnp.minimum(px2, tx2) - jnp.maximum(px1, tx1), 0.0)
    ih = jnp.maximum(jnp.minimum(py2, ty2) - jnp.maximum(py1, ty1), 0.0)
    inter = iw * ih                                        # (K_pad, tile)
    union = area_p + t_area - inter
    iou = inter * pl.reciprocal(union + 1e-6, approx=True)
    contrib = (t_valid * weight) * iou                     # (K_pad, tile)

    out_ref[0] += jnp.sum(contrib, axis=(0, 1), keepdims=True)


# ---------------------------------------------------------------------------
# Wrapper: NCHW -> attribute-major lane-dense layout, target standup prep,
# and the single fused pallas_call.
# ---------------------------------------------------------------------------
def targeted_loss_forward(psm, rm, anchors, target, transformation_matrix, *, tile=512):
    """psm: (1,2,W,L) cls logits, rm: (1,14,W,L) reg deltas (NCHW),
    anchors: (W,L,2,7) xyzhwlr, target: (K,7) 'hwl' boxes or (K,4) standup."""
    N, C, W, L = rm.shape
    assert N == 1 and C == 14
    A = W * L * 2

    # NCHW -> attribute-major (7, A):  torch permute(0,2,3,1).view(N,-1,7), transposed.
    deltas_t = jnp.transpose(
        rm[0].astype(jnp.float32).reshape(2, 7, W, L), (1, 2, 3, 0)).reshape(7, A)
    anchors_t = jnp.transpose(
        anchors.astype(jnp.float32), (3, 0, 1, 2)).reshape(7, A)
    logits_t = jnp.transpose(psm[0].astype(jnp.float32), (1, 2, 0)).reshape(1, A)

    # Grid sizing: anchors on lanes, split across 2 cores when there is enough work.
    tile = max(128, (int(tile) // 128) * 128)
    ncores = 2 if A >= 2 * tile else 1
    tpc = -(-A // (ncores * tile))                 # tiles per core
    a_pad = ncores * tpc * tile
    pad = a_pad - A

    deltas_t = jnp.pad(deltas_t, ((0, 1), (0, pad)))   # (8, A_pad)
    anchors_t = jnp.pad(anchors_t, ((0, 1), (0, pad)))  # (8, A_pad)
    logits_t = jnp.pad(logits_t, ((0, 0), (0, pad)))    # (1, A_pad)

    # Targets (tiny) -> standup boxes + area, plain JAX in the wrapper.
    tgt = jnp.asarray(target, jnp.float32)
    if tgt.ndim == 1:
        tgt = tgt[None, :]
    if tgt.shape[-1] == 7:
        tx, ty = tgt[:, 0], tgt[:, 1]
        tw, tl, tr = tgt[:, 4], tgt[:, 5], tgt[:, 6]
        ca, sa = jnp.abs(jnp.cos(tr)), jnp.abs(jnp.sin(tr))
        hx = 0.5 * (ca * tl + sa * tw)
        hy = 0.5 * (sa * tl + ca * tw)
        tgt_std = jnp.stack([tx - hx, ty - hy, tx + hx, ty + hy], axis=-1)
    else:
        tgt_std = tgt[:, :4]
    t_area = (tgt_std[:, 2] - tgt_std[:, 0]) * (tgt_std[:, 3] - tgt_std[:, 1])

    K = tgt_std.shape[0]
    K_pad = max(8, -(-K // 8) * 8)
    tgt_arr = jnp.zeros((K_pad, 8), jnp.float32)
    tgt_arr = tgt_arr.at[:K, 0:4].set(tgt_std)
    tgt_arr = tgt_arr.at[:K, 4].set(t_area)
    tgt_arr = tgt_arr.at[:K, 5].set(1.0)

    tmat = jnp.asarray(transformation_matrix, jnp.float32)
    tproj = jnp.concatenate([tmat[0, :4], tmat[1, :4]])     # (8,) f32, rows 0 and 1
    count = jnp.array([A], jnp.int32)

    grid_spec = pltpu.PrefetchScalarGridSpec(
        num_scalar_prefetch=1,                              # anchor count (SMEM)
        grid=(ncores, tpc),
        in_specs=[
            pl.BlockSpec((8, tile), lambda c, i, cnt: (0, c * tpc + i)),   # deltas
            pl.BlockSpec((8, tile), lambda c, i, cnt: (0, c * tpc + i)),   # anchors
            pl.BlockSpec((1, tile), lambda c, i, cnt: (0, c * tpc + i)),   # logits
            pl.BlockSpec((K_pad, 8), lambda c, i, cnt: (0, 0)),            # targets
            pl.BlockSpec(memory_space=pltpu.MemorySpace.SMEM),             # transform rows
        ],
        out_specs=pl.BlockSpec((1, 1, 1), lambda c, i, cnt: (c, 0, 0)),
    )

    partial_sums = pl.pallas_call(
        _targeted_loss_kernel,
        out_shape=jax.ShapeDtypeStruct((ncores, 1, 1), jnp.float32),
        grid_spec=grid_spec,
        compiler_params=pltpu.CompilerParams(
            dimension_semantics=("parallel", "arbitrary")),
    )(count, deltas_t, anchors_t, logits_t, tgt_arr, tproj)

    return jnp.sum(partial_sums)


# ---------------------------------------------------------------------------
# Pure-JAX reference (mirrors the torch code path) for correctness checking.
# ---------------------------------------------------------------------------
def _reference_loss(psm, rm, anchors, target, tmat):
    deltas = jnp.transpose(rm, (0, 2, 3, 1)).reshape(-1, 7).astype(jnp.float32)
    prob = jax.nn.sigmoid(jnp.transpose(psm, (0, 2, 3, 1)).reshape(-1).astype(jnp.float32))
    anch = anchors.reshape(-1, 7).astype(jnp.float32)
    ad = jnp.sqrt(anch[:, 4] ** 2 + anch[:, 5] ** 2)
    boxes = jnp.stack([deltas[:, 0] * ad + anch[:, 0],
                       deltas[:, 1] * ad + anch[:, 1],
                       deltas[:, 2] * anch[:, 3] + anch[:, 2],
                       jnp.exp(deltas[:, 3]) * anch[:, 3],
                       jnp.exp(deltas[:, 4]) * anch[:, 4],
                       jnp.exp(deltas[:, 5]) * anch[:, 5],
                       deltas[:, 6] + anch[:, 6]], axis=-1)

    def standup(b, T=None):
        x, y, z, h, w, l, r = (b[:, k] for k in range(7))
        sx = jnp.array([1, 1, -1, -1, 1, 1, -1, -1], jnp.float32) * 0.5
        sy = jnp.array([1, -1, -1, 1, 1, -1, -1, 1], jnp.float32) * 0.5
        sz = jnp.array([-1, -1, -1, -1, 1, 1, 1, 1], jnp.float32) * 0.5
        cx = l[:, None] * sx
        cy = w[:, None] * sy
        cz = h[:, None] * sz
        cr, sr = jnp.cos(r)[:, None], jnp.sin(r)[:, None]
        rx = cx * cr - cy * sr + x[:, None]
        ry = cx * sr + cy * cr + y[:, None]
        rz = cz + z[:, None]
        cor = jnp.stack([rx, ry, rz], axis=-1)
        if T is not None:
            ones = jnp.ones(cor.shape[:2] + (1,), jnp.float32)
            cor = jnp.einsum('ij,nkj->nki', T, jnp.concatenate([cor, ones], -1))[..., :3]
        return jnp.stack([cor[..., 0].min(1), cor[..., 1].min(1),
                          cor[..., 0].max(1), cor[..., 1].max(1)], axis=-1)

    pred = standup(boxes, tmat.astype(jnp.float32))
    tgt = standup(target.astype(jnp.float32), None)
    mask = (prob > 0.1).astype(jnp.float32)
    weight = mask * jnp.log(1.0 - prob)
    xx1 = jnp.maximum(pred[:, None, 0], tgt[None, :, 0])
    yy1 = jnp.maximum(pred[:, None, 1], tgt[None, :, 1])
    xx2 = jnp.minimum(pred[:, None, 2], tgt[None, :, 2])
    yy2 = jnp.minimum(pred[:, None, 3], tgt[None, :, 3])
    inter = jnp.maximum(xx2 - xx1, 0.0) * jnp.maximum(yy2 - yy1, 0.0)
    ap = (pred[:, 2] - pred[:, 0]) * (pred[:, 3] - pred[:, 1])
    at = (tgt[:, 2] - tgt[:, 0]) * (tgt[:, 3] - tgt[:, 1])
    iou = inter / (ap[:, None] + at[None, :] - inter)
    return jnp.sum(weight[:, None] * iou)


if __name__ == "__main__":
    key = jax.random.PRNGKey(0)
    W, L = 16, 10                      # A = W*L*2 = 320 anchors (exercises lane masking)

    # Deterministic anchor grid (x, y, z, h, w, l, yaw), 2 yaw anchors per cell.
    xs = jnp.arange(W, dtype=jnp.float32) * 4.0
    ys = jnp.arange(L, dtype=jnp.float32) * 4.0
    xg, yg = jnp.meshgrid(xs, ys, indexing='ij')
    anchors = jnp.zeros((W, L, 2, 7), jnp.float32)
    anchors = anchors.at[..., 0].set(xg[..., None])
    anchors = anchors.at[..., 1].set(yg[..., None])
    anchors = anchors.at[..., 2].set(-1.0)
    anchors = anchors.at[..., 3].set(1.56)
    anchors = anchors.at[..., 4].set(1.6)
    anchors = anchors.at[..., 5].set(3.9)
    anchors = anchors.at[:, :, 1, 6].set(jnp.pi / 2)

    k1, k2 = jax.random.split(key)
    psm = jax.random.normal(k1, (1, 2, W, L), jnp.float32)          # cls logits
    rm = 0.1 * jax.random.normal(k2, (1, 14, W, L), jnp.float32)    # reg deltas

    target = jnp.array([[8.0, 8.0, -1.0, 1.5, 1.6, 3.9, 0.3],
                        [20.0, 12.0, -1.0, 1.5, 1.7, 4.2, 1.2]], jnp.float32)
    transformation_matrix = jnp.eye(4, dtype=jnp.float32)

    loss_fn = jax.jit(targeted_loss_forward, static_argnames=("tile",))
    loss = loss_fn(psm, rm, anchors, target, transformation_matrix, tile=128)
    jax.block_until_ready(loss)

    ref = _reference_loss(psm, rm, anchors, target, transformation_matrix)
    assert jnp.isfinite(loss)
    assert jnp.allclose(loss, ref, rtol=2e-2, atol=1e-3), (loss, ref)
    print("KERNEL_OK")
</pallas_src>

<mosaic_0001>
module attributes {stable_mosaic.version = 11 : i64} {
  func.func @_targeted_loss_kernel(%arg0: i32, %arg1: i32, %arg2: memref<1xi32, #tpu.memory_space<smem>>, %arg3: memref<8x128xf32, #tpu.memory_space<vmem>>, %arg4: memref<8x128xf32, #tpu.memory_space<vmem>>, %arg5: memref<1x128xf32, #tpu.memory_space<vmem>>, %arg6: memref<8x8xf32, #tpu.memory_space<vmem>>, %arg7: memref<8xf32, #tpu.memory_space<smem>>, %arg8: memref<1x1x1xf32, #tpu.memory_space<vmem>>) attributes {dimension_semantics = [#tpu.dimension_semantics<parallel>, #tpu.dimension_semantics<arbitrary>], iteration_bounds = array<i64: 2, 2>, scalar_prefetch = 1 : i64, scratch_operands = 0 : i64, tpu.core_type = #tpu.core_type<tc>, window_params = [{transform_indices = @transform_0, window_bounds = array<i64: 8, 128>}, {transform_indices = @transform_1, window_bounds = array<i64: 8, 128>}, {transform_indices = @transform_2, window_bounds = array<i64: 1, 128>}, {pipeline_mode = #tpu.pipeline_mode<synchronous>, transform_indices = @transform_3, window_bounds = array<i64: 8, 8>}, {transform_indices = @transform_4, window_bounds = array<i64: 8>}, {transform_indices = @transform_5, window_bounds = array<i64: 1, 1, 1>}]} {
    %c0_i32 = arith.constant 0 : i32
    %0 = arith.cmpi eq, %arg1, %c0_i32 : i32
    %1 = arith.extui %0 : i1 to i32
    %c0_i32_0 = arith.constant 0 : i32
    %2 = arith.cmpi ne, %1, %c0_i32_0 : i32
    scf.if %2 {
      %cst_27 = arith.constant 0.000000e+00 : f32
      %199 = vector.broadcast %cst_27 : f32 to vector<1x1x1xf32>
      %c0_28 = arith.constant 0 : index
      %c0_29 = arith.constant 0 : index
      %c0_30 = arith.constant 0 : index
      %200 = vector.load %arg8[%c0_28, %c0_29, %c0_30] : memref<1x1x1xf32, #tpu.memory_space<vmem>>, vector<1x1x1xf32>
      tpu.vector_store %arg8[%c0_28, %c0_29, %c0_30], %199 {strides = array<i32>} : memref<1x1x1xf32, #tpu.memory_space<vmem>>, vector<1x1x1xf32>,
    } else {
    }
    %c0 = arith.constant 0 : index
    %c0_1 = arith.constant 0 : index
    %3 = vector.load %arg3[%c0, %c0_1] : memref<8x128xf32, #tpu.memory_space<vmem>>, vector<8x128xf32>
    %c0_2 = arith.constant 0 : index
    %c0_3 = arith.constant 0 : index
    %4 = vector.load %arg4[%c0_2, %c0_3] : memref<8x128xf32, #tpu.memory_space<vmem>>, vector<8x128xf32>
    %c0_4 = arith.constant 0 : index
    %c0_5 = arith.constant 0 : index
    %5 = vector.load %arg5[%c0_4, %c0_5] : memref<1x128xf32, #tpu.memory_space<vmem>>, vector<1x128xf32>
    %6 = vector.extract_strided_slice %4 {offsets = [4, 0], sizes = [1, 128], strides = [1, 1]} : vector<8x128xf32> to vector<1x128xf32>
    %7 = vector.extract_strided_slice %4 {offsets = [4, 0], sizes = [1, 128], strides = [1, 1]} : vector<8x128xf32> to vector<1x128xf32>
    %8 = arith.mulf %6, %7 : vector<1x128xf32>
    %9 = vector.extract_strided_slice %4 {offsets = [5, 0], sizes = [1, 128], strides = [1, 1]} : vector<8x128xf32> to vector<1x128xf32>
    %10 = vector.extract_strided_slice %4 {offsets = [5, 0], sizes = [1, 128], strides = [1, 1]} : vector<8x128xf32> to vector<1x128xf32>
    %11 = arith.mulf %9, %10 : vector<1x128xf32>
    %12 = arith.addf %8, %11 : vector<1x128xf32>
    %13 = math.sqrt %12 : vector<1x128xf32>
    %14 = vector.extract_strided_slice %3 {offsets = [0, 0], sizes = [1, 128], strides = [1, 1]} : vector<8x128xf32> to vector<1x128xf32>
    %15 = arith.mulf %14, %13 : vector<1x128xf32>
    %16 = vector.extract_strided_slice %4 {offsets = [0, 0], sizes = [1, 128], strides = [1, 1]} : vector<8x128xf32> to vector<1x128xf32>
    %17 = arith.addf %15, %16 : vector<1x128xf32>
    %18 = vector.extract_strided_slice %3 {offsets = [1, 0], sizes = [1, 128], strides = [1, 1]} : vector<8x128xf32> to vector<1x128xf32>
    %19 = arith.mulf %18, %13 : vector<1x128xf32>
    %20 = vector.extract_strided_slice %4 {offsets = [1, 0], sizes = [1, 128], strides = [1, 1]} : vector<8x128xf32> to vector<1x128xf32>
    %21 = arith.addf %19, %20 : vector<1x128xf32>
    %22 = vector.extract_strided_slice %3 {offsets = [2, 0], sizes = [1, 128], strides = [1, 1]} : vector<8x128xf32> to vector<1x128xf32>
    %23 = vector.extract_strided_slice %4 {offsets = [3, 0], sizes = [1, 128], strides = [1, 1]} : vector<8x128xf32> to vector<1x128xf32>
    %24 = arith.mulf %22, %23 : vector<1x128xf32>
    %25 = vector.extract_strided_slice %4 {offsets = [2, 0], sizes = [1, 128], strides = [1, 1]} : vector<8x128xf32> to vector<1x128xf32>
    %26 = arith.addf %24, %25 : vector<1x128xf32>
    %27 = vector.extract_strided_slice %3 {offsets = [3, 0], sizes = [1, 128], strides = [1, 1]} : vector<8x128xf32> to vector<1x128xf32>
    %28 = math.exp %27 : vector<1x128xf32>
    %29 = vector.extract_strided_slice %4 {offsets = [3, 0], sizes = [1, 128], strides = [1, 1]} : vector<8x128xf32> to vector<1x128xf32>
    %30 = arith.mulf %28, %29 : vector<1x128xf32>
    %31 = vector.extract_strided_slice %3 {offsets = [4, 0], sizes = [1, 128], strides = [1, 1]} : vector<8x128xf32> to vector<1x128xf32>
    %32 = math.exp %31 : vector<1x128xf32>
    %33 = vector.extract_strided_slice %4 {offsets = [4, 0], sizes = [1, 128], strides = [1, 1]} : vector<8x128xf32> to vector<1x128xf32>
    %34 = arith.mulf %32, %33 : vector<1x128xf32>
    %35 = vector.extract_strided_slice %3 {offsets = [5, 0], sizes = [1, 128], strides = [1, 1]} : vector<8x128xf32> to vector<1x128xf32>
    %36 = math.exp %35 : vector<1x128xf32>
    %37 = vector.extract_strided_slice %4 {offsets = [5, 0], sizes = [1, 128], strides = [1, 1]} : vector<8x128xf32> to vector<1x128xf32>
    %38 = arith.mulf %36, %37 : vector<1x128xf32>
    %39 = vector.extract_strided_slice %3 {offsets = [6, 0], sizes = [1, 128], strides = [1, 1]} : vector<8x128xf32> to vector<1x128xf32>
    %40 = vector.extract_strided_slice %4 {offsets = [6, 0], sizes = [1, 128], strides = [1, 1]} : vector<8x128xf32> to vector<1x128xf32>
    %41 = arith.addf %39, %40 : vector<1x128xf32>
    %c0_6 = arith.constant 0 : index
    %42 = memref.load %arg7[%c0_6] : memref<8xf32, #tpu.memory_space<smem>>
    %c1 = arith.constant 1 : index
    %43 = memref.load %arg7[%c1] : memref<8xf32, #tpu.memory_space<smem>>
    %c2 = arith.constant 2 : index
    %44 = memref.load %arg7[%c2] : memref<8xf32, #tpu.memory_space<smem>>
    %c3 = arith.constant 3 : index
    %45 = memref.load %arg7[%c3] : memref<8xf32, #tpu.memory_space<smem>>
    %c4 = arith.constant 4 : index
    %46 = memref.load %arg7[%c4] : memref<8xf32, #tpu.memory_space<smem>>
    %c5 = arith.constant 5 : index
    %47 = memref.load %arg7[%c5] : memref<8xf32, #tpu.memory_space<smem>>
    %c6 = arith.constant 6 : index
    %48 = memref.load %arg7[%c6] : memref<8xf32, #tpu.memory_space<smem>>
    %c7 = arith.constant 7 : index
    %49 = memref.load %arg7[%c7] : memref<8xf32, #tpu.memory_space<smem>>
    %50 = math.cos %41 : vector<1x128xf32>
    %51 = math.sin %41 : vector<1x128xf32>
    %52 = vector.broadcast %42 : f32 to vector<1x128xf32>
    %53 = arith.mulf %52, %17 : vector<1x128xf32>
    %54 = vector.broadcast %43 : f32 to vector<1x128xf32>
    %55 = arith.mulf %54, %21 : vector<1x128xf32>
    %56 = arith.addf %53, %55 : vector<1x128xf32>
    %57 = vector.broadcast %44 : f32 to vector<1x128xf32>
    %58 = arith.mulf %57, %26 : vector<1x128xf32>
    %59 = arith.addf %56, %58 : vector<1x128xf32>
    %60 = vector.broadcast %45 : f32 to vector<1x128xf32>
    %61 = arith.addf %59, %60 : vector<1x128xf32>
    %62 = vector.broadcast %46 : f32 to vector<1x128xf32>
    %63 = arith.mulf %62, %17 : vector<1x128xf32>
    %64 = vector.broadcast %47 : f32 to vector<1x128xf32>
    %65 = arith.mulf %64, %21 : vector<1x128xf32>
    %66 = arith.addf %63, %65 : vector<1x128xf32>
    %67 = vector.broadcast %48 : f32 to vector<1x128xf32>
    %68 = arith.mulf %67, %26 : vector<1x128xf32>
    %69 = arith.addf %66, %68 : vector<1x128xf32>
    %70 = vector.broadcast %49 : f32 to vector<1x128xf32>
    %71 = arith.addf %69, %70 : vector<1x128xf32>
    %72 = vector.broadcast %42 : f32 to vector<1x128xf32>
    %73 = arith.mulf %72, %50 : vector<1x128xf32>
    %74 = vector.broadcast %43 : f32 to vector<1x128xf32>
    %75 = arith.mulf %74, %51 : vector<1x128xf32>
    %76 = arith.addf %73, %75 : vector<1x128xf32>
    %77 = math.absf %76 : vector<1x128xf32>
    %78 = arith.mulf %77, %38 : vector<1x128xf32>
    %79 = vector.broadcast %43 : f32 to vector<1x128xf32>
    %80 = arith.mulf %79, %50 : vector<1x128xf32>
    %81 = vector.broadcast %42 : f32 to vector<1x128xf32>
    %82 = arith.mulf %81, %51 : vector<1x128xf32>
    %83 = arith.subf %80, %82 : vector<1x128xf32>
    %84 = math.absf %83 : vector<1x128xf32>
    %85 = arith.mulf %84, %34 : vector<1x128xf32>
    %86 = arith.addf %78, %85 : vector<1x128xf32>
    %87 = math.absf %44 : f32
    %88 = vector.broadcast %87 : f32 to vector<1x128xf32>
    %89 = arith.mulf %88, %30 : vector<1x128xf32>
    %90 = arith.addf %86, %89 : vector<1x128xf32>
    %cst = arith.constant 5.000000e-01 : f32
    %91 = vector.broadcast %cst : f32 to vector<1x128xf32>
    %92 = arith.mulf %90, %91 : vector<1x128xf32>
    %93 = vector.broadcast %46 : f32 to vector<1x128xf32>
    %94 = arith.mulf %93, %50 : vector<1x128xf32>
    %95 = vector.broadcast %47 : f32 to vector<1x128xf32>
    %96 = arith.mulf %95, %51 : vector<1x128xf32>
    %97 = arith.addf %94, %96 : vector<1x128xf32>
    %98 = math.absf %97 : vector<1x128xf32>
    %99 = arith.mulf %98, %38 : vector<1x128xf32>
    %100 = vector.broadcast %47 : f32 to vector<1x128xf32>
    %101 = arith.mulf %100, %50 : vector<1x128xf32>
    %102 = vector.broadcast %46 : f32 to vector<1x128xf32>
    %103 = arith.mulf %102, %51 : vector<1x128xf32>
    %104 = arith.subf %101, %103 : vector<1x128xf32>
    %105 = math.absf %104 : vector<1x128xf32>
    %106 = arith.mulf %105, %34 : vector<1x128xf32>
    %107 = arith.addf %99, %106 : vector<1x128xf32>
    %108 = math.absf %48 : f32
    %109 = vector.broadcast %108 : f32 to vector<1x128xf32>
    %110 = arith.mulf %109, %30 : vector<1x128xf32>
    %111 = arith.addf %107, %110 : vector<1x128xf32>
    %cst_7 = arith.constant 5.000000e-01 : f32
    %112 = vector.broadcast %cst_7 : f32 to vector<1x128xf32>
    %113 = arith.mulf %111, %112 : vector<1x128xf32>
    %114 = arith.subf %61, %92 : vector<1x128xf32>
    %115 = arith.addf %61, %92 : vector<1x128xf32>
    %116 = arith.subf %71, %113 : vector<1x128xf32>
    %117 = arith.addf %71, %113 : vector<1x128xf32>
    %cst_8 = arith.constant 4.000000e+00 : f32
    %118 = vector.broadcast %cst_8 : f32 to vector<1x128xf32>
    %119 = arith.mulf %118, %92 : vector<1x128xf32>
    %120 = arith.mulf %119, %113 : vector<1x128xf32>
    %c2_i32 = arith.constant 2 : i32
    %121 = arith.muli %arg0, %c2_i32 : i32
    %122 = arith.addi %121, %arg1 : i32
    %c128_i32 = arith.constant 128 : i32
    %123 = arith.muli %122, %c128_i32 : i32
    %124 = tpu.iota {dimensions = array<i32: 1>} : vector<1x128xi32>
    %125 = vector.broadcast %123 : i32 to vector<1x128xi32>
    %126 = arith.addi %124, %125 : vector<1x128xi32>
    %c0_9 = arith.constant 0 : index
    %127 = memref.load %arg2[%c0_9] : memref<1xi32, #tpu.memory_space<smem>>
    %128 = vector.broadcast %127 : i32 to vector<1x128xi32>
    %129 = arith.cmpi slt, %126, %128 : vector<1x128xi32>
    %130 = arith.extui %129 : vector<1x128xi1> to vector<1x128xi32>
    %131 = arith.sitofp %130 : vector<1x128xi32> to vector<1x128xf32>
    %cst_10 = arith.constant -2.19722462 : f32
    %132 = vector.broadcast %cst_10 : f32 to vector<1x128xf32>
    %133 = arith.cmpf ogt, %5, %132 : vector<1x128xf32>
    %134 = arith.extui %133 : vector<1x128xi1> to vector<1x128xi32>
    %135 = arith.sitofp %134 : vector<1x128xi32> to vector<1x128xf32>
    %cst_11 = arith.constant 0.000000e+00 : f32
    %136 = vector.broadcast %cst_11 : f32 to vector<1x128xf32>
    %137 = arith.maximumf %5, %136 : vector<1x128xf32>
    %138 = math.absf %5 : vector<1x128xf32>
    %cst_12 = arith.constant 0.000000e+00 : f32
    %139 = vector.broadcast %cst_12 : f32 to vector<1x128xf32>
    %140 = arith.subf %139, %138 : vector<1x128xf32>
    %141 = math.exp %140 : vector<1x128xf32>
    %cst_13 = arith.constant 1.000000e+00 : f32
    %142 = vector.broadcast %cst_13 : f32 to vector<1x128xf32>
    %143 = arith.addf %142, %141 : vector<1x128xf32>
    %144 = math.log %143 : vector<1x128xf32>
    %145 = arith.addf %137, %144 : vector<1x128xf32>
    %146 = arith.mulf %135, %131 : vector<1x128xf32>
    %cst_14 = arith.constant 0.000000e+00 : f32
    %147 = vector.broadcast %cst_14 : f32 to vector<1x128xf32>
    %148 = arith.subf %147, %145 : vector<1x128xf32>
    %149 = arith.mulf %146, %148 : vector<1x128xf32>
    %c0_15 = arith.constant 0 : index
    %c0_16 = arith.constant 0 : index
    %150 = vector.load %arg6[%c0_15, %c0_16] : memref<8x8xf32, #tpu.memory_space<vmem>>, vector<8x8xf32>
    %151 = vector.extract_strided_slice %150 {offsets = [0, 0], sizes = [8, 1], strides = [1, 1]} : vector<8x8xf32> to vector<8x1xf32>
    %152 = vector.extract_strided_slice %150 {offsets = [0, 1], sizes = [8, 1], strides = [1, 1]} : vector<8x8xf32> to vector<8x1xf32>
    %153 = vector.extract_strided_slice %150 {offsets = [0, 2], sizes = [8, 1], strides = [1, 1]} : vector<8x8xf32> to vector<8x1xf32>
    %154 = vector.extract_strided_slice %150 {offsets = [0, 3], sizes = [8, 1], strides = [1, 1]} : vector<8x8xf32> to vector<8x1xf32>
    %155 = vector.extract_strided_slice %150 {offsets = [0, 4], sizes = [8, 1], strides = [1, 1]} : vector<8x8xf32> to vector<8x1xf32>
    %156 = vector.extract_strided_slice %150 {offsets = [0, 5], sizes = [8, 1], strides = [1, 1]} : vector<8x8xf32> to vector<8x1xf32>
    %157 = vector.broadcast %115 : vector<1x128xf32> to vector<8x128xf32>
    %158 = vector.broadcast %153 : vector<8x1xf32> to vector<8x128xf32>
    %159 = arith.minimumf %157, %158 : vector<8x128xf32>
    %160 = vector.broadcast %114 : vector<1x128xf32> to vector<8x128xf32>
    %161 = vector.broadcast %151 : vector<8x1xf32> to vector<8x128xf32>
    %162 = arith.maximumf %160, %161 : vector<8x128xf32>
    %163 = arith.subf %159, %162 : vector<8x128xf32>
    %cst_17 = arith.constant 0.000000e+00 : f32
    %164 = vector.broadcast %cst_17 : f32 to vector<8x128xf32>
    %165 = arith.maximumf %163, %164 : vector<8x128xf32>
    %166 = vector.broadcast %117 : vector<1x128xf32> to vector<8x128xf32>
    %167 = vector.broadcast %154 : vector<8x1xf32> to vector<8x128xf32>
    %168 = arith.minimumf %166, %167 : vector<8x128xf32>
    %169 = vector.broadcast %116 : vector<1x128xf32> to vector<8x128xf32>
    %170 = vector.broadcast %152 : vector<8x1xf32> to vector<8x128xf32>
    %171 = arith.maximumf %169, %170 : vector<8x128xf32>
    %172 = arith.subf %168, %171 : vector<8x128xf32>
    %cst_18 = arith.constant 0.000000e+00 : f32
    %173 = vector.broadcast %cst_18 : f32 to vector<8x128xf32>
    %174 = arith.maximumf %172, %173 : vector<8x128xf32>
    %175 = arith.mulf %165, %174 : vector<8x128xf32>
    %176 = vector.broadcast %120 : vector<1x128xf32> to vector<8x128xf32>
    %177 = vector.broadcast %155 : vector<8x1xf32> to vector<8x128xf32>
    %178 = arith.addf %176, %177 : vector<8x128xf32>
    %179 = arith.subf %178, %175 : vector<8x128xf32>
    %cst_19 = arith.constant 9.99999997E-7 : f32
    %180 = vector.broadcast %cst_19 : f32 to vector<8x128xf32>
    %181 = arith.addf %179, %180 : vector<8x128xf32>
    %182 = tpu.reciprocal %181 {approx = true} : vector<8x128xf32> -> vector<8x128xf32>
    %183 = arith.mulf %175, %182 : vector<8x128xf32>
    %184 = vector.broadcast %156 : vector<8x1xf32> to vector<8x128xf32>
    %185 = vector.broadcast %149 : vector<1x128xf32> to vector<8x128xf32>
    %186 = arith.mulf %184, %185 : vector<8x128xf32>
    %187 = arith.mulf %186, %183 : vector<8x128xf32>
    %c0_20 = arith.constant 0 : index
    %c0_21 = arith.constant 0 : index
    %c0_22 = arith.constant 0 : index
    %188 = vector.load %arg8[%c0_20, %c0_21, %c0_22] : memref<1x1x1xf32, #tpu.memory_space<vmem>>, vector<1x1x1xf32>
    %189 = vector.shape_cast %188 : vector<1x1x1xf32> to vector<1x1xf32>
    %190 = vector.shape_cast %187 : vector<8x128xf32> to vector<1x8x128xf32>
    %cst_23 = arith.constant dense<0.000000e+00> : vector<1xf32>
    %191 = vector.multi_reduction <add>, %190, %cst_23 [1, 2] : vector<1x8x128xf32> to vector<1xf32>
    %192 = vector.shape_cast %191 : vector<1xf32> to vector<1x1x1xf32>
    %193 = vector.extract %192[0, 0, 0] : f32 from vector<1x1x1xf32>
    %194 = vector.broadcast %193 : f32 to vector<1x1xf32>
    %195 = arith.addf %189, %194 : vector<1x1xf32>
    %c0_24 = arith.constant 0 : index
    %c0_25 = arith.constant 0 : index
    %c0_26 = arith.constant 0 : index
    %196 = vector.load %arg8[%c0_24, %c0_25, %c0_26] : memref<1x1x1xf32, #tpu.memory_space<vmem>>, vector<1x1x1xf32>
    %197 = vector.shape_cast %196 : vector<1x1x1xf32> to vector<1x1xf32>
    %198 = vector.shape_cast %195 : vector<1x1xf32> to vector<1x1x1xf32>
    tpu.vector_store %arg8[%c0_24, %c0_25, %c0_26], %198 {strides = array<i32>} : memref<1x1x1xf32, #tpu.memory_space<vmem>>, vector<1x1x1xf32>,
    return
  }
  func.func @transform_0(%arg0: i32, %arg1: i32, %arg2: memref<1xi32, #tpu.memory_space<smem>>) -> (i32, i32) {
    %c2_i32 = arith.constant 2 : i32
    %0 = arith.muli %arg0, %c2_i32 : i32
    %1 = arith.addi %0, %arg1 : i32
    %c0_i32 = arith.constant 0 : i32
    %c0_i32_0 = arith.constant 0 : i32
    return %c0_i32, %1 : i32, i32
  }
  func.func @transform_1(%arg0: i32, %arg1: i32, %arg2: memref<1xi32, #tpu.memory_space<smem>>) -> (i32, i32) {
    %c2_i32 = arith.constant 2 : i32
    %0 = arith.muli %arg0, %c2_i32 : i32
    %1 = arith.addi %0, %arg1 : i32
    %c0_i32 = arith.constant 0 : i32
    %c0_i32_0 = arith.constant 0 : i32
    return %c0_i32, %1 : i32, i32
  }
  func.func @transform_2(%arg0: i32, %arg1: i32, %arg2: memref<1xi32, #tpu.memory_space<smem>>) -> (i32, i32) {
    %c2_i32 = arith.constant 2 : i32
    %0 = arith.muli %arg0, %c2_i32 : i32
    %1 = arith.addi %0, %arg1 : i32
    %c0_i32 = arith.constant 0 : i32
    %c0_i32_0 = arith.constant 0 : i32
    return %c0_i32, %1 : i32, i32
  }
  func.func @transform_3(%arg0: i32, %arg1: i32, %arg2: memref<1xi32, #tpu.memory_space<smem>>) -> (i32, i32) {
    %c0_i32 = arith.constant 0 : i32
    %c0_i32_0 = arith.constant 0 : i32
    %c0_i32_1 = arith.constant 0 : i32
    return %c0_i32, %c0_i32_0 : i32, i32
  }
  func.func @transform_4(%arg0: i32, %arg1: i32, %arg2: memref<1xi32, #tpu.memory_space<smem>>) -> i32 {
    %c0_i32 = arith.constant 0 : i32
    %c0_i32_0 = arith.constant 0 : i32
    return %c0_i32 : i32
  }
  func.func @transform_5(%arg0: i32, %arg1: i32, %arg2: memref<1xi32, #tpu.memory_space<smem>>) -> (i32, i32, i32) {
    %c0_i32 = arith.constant 0 : i32
    %c0_i32_0 = arith.constant 0 : i32
    %c0_i32_1 = arith.constant 0 : i32
    return %arg0, %c0_i32, %c0_i32_0 : i32, i32, i32
  }
}

</mosaic_0001>

<llo_original>
// kernel: squeeze.9
$region0: #{squeeze.9}
  %s0 = inlined_call_operand.vmem [shape: f32[1,14,16,10], index: 0, kind: input, shape index: {}]
  %s1 = inlined_call_operand.vmem [shape: f32[2,7,16,10], index: 1, kind: output, shape index: {}]
  %v2 = vld [vmem:[%s0] sm:$0xff]
  %vm3 = vcmask 130048
  %4 = vst.msk [vmem:[%s1] sm:$0x7f] %vm3, %v2
  %s5 = scalar_lea.vmem %s1, 1
  %6 = vst.msk [vmem:[%s5] sm:$0x80] %vm3, %v2
  %s7 = scalar_lea.vmem %s0, 8
  %v8 = vld [vmem:[%s7] sm:$0x3f]
  %vm9 = vcmask 130048
  %s10 = scalar_lea.vmem %s1, 9
  %11 = vst.msk [vmem:[%s10] sm:$0x3f] %vm9, %v8
  %s12 = scalar_lea.vmem %s0, 16
  %v13 = vld [vmem:[%s12] sm:$0xff]
  %vm14 = vcmask 130048
  %s15 = scalar_lea.vmem %s1, 16
  %16 = vst.msk [vmem:[%s15] sm:$0x7f] %vm14, %v13
  %s17 = scalar_lea.vmem %s1, 17
  %18 = vst.msk [vmem:[%s17] sm:$0x80] %vm14, %v13
  %s19 = scalar_lea.vmem %s0, 24
  %v20 = vld [vmem:[%s19] sm:$0x3f]
  %vm21 = vcmask 130048
  %s22 = scalar_lea.vmem %s1, 25
  %23 = vst.msk [vmem:[%s22] sm:$0x3f] %vm21, %v20
  %s24 = scalar_lea.vmem %s0, 32
  %v25 = vld [vmem:[%s24] sm:$0xff]
  %vm26 = vcmask 130048
  %s27 = scalar_lea.vmem %s1, 32
  %28 = vst.msk [vmem:[%s27] sm:$0x7f] %vm26, %v25
  %s29 = scalar_lea.vmem %s1, 33
  %30 = vst.msk [vmem:[%s29] sm:$0x80] %vm26, %v25
  %s31 = scalar_lea.vmem %s0, 40
  %v32 = vld [vmem:[%s31] sm:$0x3f]
  %vm33 = vcmask 130048
  %s34 = scalar_lea.vmem %s1, 41
  %35 = vst.msk [vmem:[%s34] sm:$0x3f] %vm33, %v32
  %s36 = scalar_lea.vmem %s0, 48
  %v37 = vld [vmem:[%s36] sm:$0xff]
  %vm38 = vcmask 130048
  %s39 = scalar_lea.vmem %s1, 48
  %40 = vst.msk [vmem:[%s39] sm:$0x7f] %vm38, %v37
  %s41 = scalar_lea.vmem %s1, 49
  %42 = vst.msk [vmem:[%s41] sm:$0x80] %vm38, %v37
  %s43 = scalar_lea.vmem %s0, 56
  %v44 = vld [vmem:[%s43] sm:$0x3f]
  %vm45 = vcmask 130048
  %s46 = scalar_lea.vmem %s1, 57
  %47 = vst.msk [vmem:[%s46] sm:$0x3f] %vm45, %v44
  %s48 = scalar_lea.vmem %s0, 64
  %v49 = vld [vmem:[%s48] sm:$0xff]
  %vm50 = vcmask 130048
  %s51 = scalar_lea.vmem %s1, 64
  %52 = vst.msk [vmem:[%s51] sm:$0x7f] %vm50, %v49
  %s53 = scalar_lea.vmem %s1, 65
  %54 = vst.msk [vmem:[%s53] sm:$0x80] %vm50, %v49
  %s55 = scalar_lea.vmem %s0, 72
  %v56 = vld [vmem:[%s55] sm:$0x3f]
  %vm57 = vcmask 130048
  %s58 = scalar_lea.vmem %s1, 73
  %59 = vst.msk [vmem:[%s58] sm:$0x3f] %vm57, %v56
  %s60 = scalar_lea.vmem %s0, 80
  %v61 = vld [vmem:[%s60] sm:$0xff]
  %vm62 = vcmask 130048
  %s63 = scalar_lea.vmem %s1, 80
  %64 = vst.msk [vmem:[%s63] sm:$0x7f] %vm62, %v61
  %s65 = scalar_lea.vmem %s1, 81
  %66 = vst.msk [vmem:[%s65] sm:$0x80] %vm62, %v61
  %s67 = scalar_lea.vmem %s0, 88
  %v68 = vld [vmem:[%s67] sm:$0x3f]
  %vm69 = vcmask 130048
  %s70 = scalar_lea.vmem %s1, 89
  %71 = vst.msk [vmem:[%s70] sm:$0x3f] %vm69, %v68
  %s72 = scalar_lea.vmem %s0, 96
  %v73 = vld [vmem:[%s72] sm:$0xff]
  %vm74 = vcmask 130048
  %s75 = scalar_lea.vmem %s1, 96
  %76 = vst.msk [vmem:[%s75] sm:$0x7f] %vm74, %v73
  %s77 = scalar_lea.vmem %s1, 97
  %78 = vst.msk [vmem:[%s77] sm:$0x80] %vm74, %v73
  %s79 = scalar_lea.vmem %s0, 104
  %v80 = vld [vmem:[%s79] sm:$0x3f]
  %vm81 = vcmask 130048
  %s82 = scalar_lea.vmem %s1, 105
  %83 = vst.msk [vmem:[%s82] sm:$0x3f] %vm81, %v80
  %s84 = scalar_lea.vmem %s0, 112
  %v85 = vld [vmem:[%s84] sm:$0xff]
  %vm86 = vcmask 130048
  %s87 = scalar_lea.vmem %s1, 112
  %88 = vst.msk [vmem:[%s87] sm:$0x7f] %vm86, %v85
  %s89 = scalar_lea.vmem %s1, 113
  %90 = vst.msk [vmem:[%s89] sm:$0x80] %vm86, %v85
  %s91 = scalar_lea.vmem %s0, 120
  %v92 = vld [vmem:[%s91] sm:$0x3f]
  %vm93 = vcmask 130048
  %s94 = scalar_lea.vmem %s1, 121
  %95 = vst.msk [vmem:[%s94] sm:$0x3f] %vm93, %v92
  %s96 = scalar_lea.vmem %s0, 128
  %v97 = vld [vmem:[%s96] sm:$0xff]
  %vm98 = vcmask 130048
  %s99 = scalar_lea.vmem %s1, 128
  %100 = vst.msk [vmem:[%s99] sm:$0x7f] %vm98, %v97
  %s101 = scalar_lea.vmem %s1, 129
  %102 = vst.msk [vmem:[%s101] sm:$0x80] %vm98, %v97
  %s103 = scalar_lea.vmem %s0, 136
  %v104 = vld [vmem:[%s103] sm:$0x3f]
  %vm105 = vcmask 130048
  %s106 = scalar_lea.vmem %s1, 137
  %107 = vst.msk [vmem:[%s106] sm:$0x3f] %vm105, %v104
  %s108 = scalar_lea.vmem %s0, 144
  %v109 = vld [vmem:[%s108] sm:$0xff]
  %vm110 = vcmask 130048
  %s111 = scalar_lea.vmem %s1, 144
  %112 = vst.msk [vmem:[%s111] sm:$0x7f] %vm110, %v109
  %s113 = scalar_lea.vmem %s1, 145
  %114 = vst.msk [vmem:[%s113] sm:$0x80] %vm110, %v109
  %s115 = scalar_lea.vmem %s0, 152
  %v116 = vld [vmem:[%s115] sm:$0x3f]
  %vm117 = vcmask 130048
  %s118 = scalar_lea.vmem %s1, 153
  %119 = vst.msk [vmem:[%s118] sm:$0x3f] %vm117, %v116

// kernel: targeted_loss_forward.1
$region0: #{targeted_loss_forward.1}
  #allocation0 [shape = 'u32[]', space=smem, size = 0x4, offset = 0x4, fixed_abs, tag = 'smem constant byte address 0x4 - core index']
  #allocation1 [shape = 'u32[72,128]{1,0:T(1,128)}', space=vmem, size = 0x9000, scoped, tag = 'internal scratch']
  #allocation2 [shape = 's32[1]{0}', space=sflag, size = 0x4, scoped, tag = 'scoped memory for targeted_loss_forward.1']
  #allocation3 [shape = 's32[1]{0:T(128)S(6)}', space=smem, size = 0x200, scoped, tag = 'prefetched SMEM operand 0']
  %s0 = inlined_call_operand.<no memory space> [shape: s32[1], index: 0, kind: input, shape index: {}]
  %s1 = inlined_call_operand.vmem [shape: f32[8,512], index: 1, kind: input, shape index: {}]
  %s2 = inlined_call_operand.vmem [shape: f32[8,512], index: 2, kind: input, shape index: {}]
  %s3 = inlined_call_operand.vmem [shape: f32[1,512], index: 3, kind: input, shape index: {}]
  %s4 = inlined_call_operand.vmem [shape: f32[8,8], index: 4, kind: input, shape index: {}]
  %s5 = inlined_call_operand.vmem [shape: f32[8], index: 5, kind: input, shape index: {}]
  %s6 = inlined_call_operand.vmem [shape: f32[2,1,1], index: 6, kind: output, shape index: {}]
  %s7 = sld [smem:[#allocation0]]
  $region61: #{targeted_loss_forward.1} parent=0
    _
  %s9 = ssub.s32 1, %s7
  %s10 = scalar_select 0, %s9, %s7
  %11 = sst [smem:[#allocation3]] %s0
  $region1: #{targeted_loss_forward.1} parent=0
    #allocation4 [shape = 'u8[512]{0}', space=smem, size = 0x200, scoped, tag = 'input window, operand 5, single buffered']
    #allocation5 [shape = 's32[2]{0}', space=sflag, size = 0x8, scoped, tag = 'scoped memory for targeted_loss_forward.1']
    %12 = vsyncpa [#allocation5], 0
    loop: start=0, step=1, limit=6
    $region2: #{targeted_loss_forward.1} parent=1 // loop_pre_header
      _
    $region3: #{targeted_loss_forward.1} parent=1 // loop_header
      %s14 = sphi 0, %s18
      %p15 = scmp.ge.s32.totalorder %s14, 6
      %s21 = sphi 0, %s33
      %s22 = sphi 0, %s29
      %s23 = sphi 0, %s21
      %s24 = sphi 0, %s22
      %s25 = sphi 0, %s23
      %s26 = sphi 0, %s24
      %s40 = sphi 0, %s42
      %s43 = sphi 0, %s40
      %s44 = sphi 0, %s43
      %s60 = sphi 0, %s44
      %s70 = sphi 0, %s72
      %s73 = sphi 0, %s70
      %s74 = sphi 0, %s73
      %s90 = sphi 0, %s74
      %s100 = sphi 0, %s102
      %s103 = sphi 0, %s100
      %s104 = sphi 0, %s103
      %s120 = sphi 0, %s104
      %s124 = sphi 0, %s124
      %s126 = sphi 0, %s124
      %s127 = sphi 0, %s126
      %s141 = sphi 0, %s127
      %s145 = sphi 0, %s145
      %s147 = sphi 0, %s145
      %s148 = sphi 0, %s147
      %s162 = sphi 0, %s148
      %s168 = sphi 0, %s170
      %s171 = sphi 0, %s168
      %s172 = sphi 0, %s171
      %s188 = sphi 0, %s172
    $region4: #{targeted_loss_forward.1} parent=1 // loop_header_branch
      %17 = sbr.rel (%p15) target = $region8
    $region5: #{targeted_loss_forward.1} parent=1 // loop_body
      %s19 = ssub.s32 %s14, 1
      %s20 = ssub.s32 %s14, 2
      %s27 = sadd.s32 1, %s22
      %p28 = scmp.ge.s32.totalorder %s27, 2
      %s29 = scalar_select %p28, 0, %s27
      %s30 = sadd.s32 1, %s21
      %s31 = scalar_select %p28, %s30, %s21
      %p32 = scmp.ge.s32.totalorder %s31, 2
      %s33 = scalar_select %p32, 0, %s31
      %s34 = smul.u32 %s21, 2
      %s35 = sadd.s32 %s34, %s22
      %s36 = smul.u32 %s33, 2
      %s37 = sadd.s32 %s36, %s29
      %s38 = ssub.s32 %s35, %s37
      %p39 = scmp.eq.s32.totalorder %s38, 0
      %s41 = sadd.s32 %s40, 1
      %s42 = scalar_select %p39, %s40, %s41
      %p45 = pneg %p39
      %p46 = scmp.eq.s32.totalorder %s14, 3
      %p47 = por %p45, %p46
      %p48 = scmp.ne.s32.totalorder %s40, %s43
      %p49 = scmp.eq.s32.totalorder %s14, 0
      %p50 = por %p48, %p49
      %p51 = scmp.ne.s32.totalorder %s40, %s43
      %p52 = scmp.eq.s32.totalorder %s19, 3
      %p53 = por %p51, %p52
      %p54 = scmp.ne.s32.totalorder %s43, %s44
      %p55 = scmp.eq.s32.totalorder %s19, 0
      %p56 = por %p54, %p55
      %p57 = scmp.ne.s32.totalorder %s43, %s44
      %p58 = scmp.eq.s32.totalorder %s20, 3
      %p59 = por %p57, %p58
      %p61 = scmp.ne.s32.totalorder %s44, %s60
      %p62 = scmp.eq.s32.totalorder %s20, 0
      %p63 = por %p61, %p62
      %s64 = smul.u32 %s21, 2
      %s65 = sadd.s32 %s64, %s22
      %s66 = smul.u32 %s33, 2
      %s67 = sadd.s32 %s66, %s29
      %s68 = ssub.s32 %s65, %s67
      %p69 = scmp.eq.s32.totalorder %s68, 0
      %s71 = sadd.s32 %s70, 1
      %s72 = scalar_select %p69, %s70, %s71
      %p75 = pneg %p69
      %p76 = scmp.eq.s32.totalorder %s14, 3
      %p77 = por %p75, %p76
      %p78 = scmp.ne.s32.totalorder %s70, %s73
      %p79 = scmp.eq.s32.totalorder %s14, 0
      %p80 = por %p78, %p79
      %p81 = scmp.ne.s32.totalorder %s70, %s73
      %p82 = scmp.eq.s32.totalorder %s19, 3
      %p83 = por %p81, %p82
      %p84 = scmp.ne.s32.totalorder %s73, %s74
      %p85 = scmp.eq.s32.totalorder %s19, 0
      %p86 = por %p84, %p85
      %p87 = scmp.ne.s32.totalorder %s73, %s74
      %p88 = scmp.eq.s32.totalorder %s20, 3
      %p89 = por %p87, %p88
      %p91 = scmp.ne.s32.totalorder %s74, %s90
      %p92 = scmp.eq.s32.totalorder %s20, 0
      %p93 = por %p91, %p92
      %s94 = smul.u32 %s21, 2
      %s95 = sadd.s32 %s94, %s22
      %s96 = smul.u32 %s33, 2
      %s97 = sadd.s32 %s96, %s29
      %s98 = ssub.s32 %s95, %s97
      %p99 = scmp.eq.s32.totalorder %s98, 0
      %s101 = sadd.s32 %s100, 1
      %s102 = scalar_select %p99, %s100, %s101
      %p105 = pneg %p99
      %p106 = scmp.eq.s32.totalorder %s14, 3
      %p107 = por %p105, %p106
      %p108 = scmp.ne.s32.totalorder %s100, %s103
      %p109 = scmp.eq.s32.totalorder %s14, 0
      %p110 = por %p108, %p109
      %p111 = scmp.ne.s32.totalorder %s100, %s103
      %p112 = scmp.eq.s32.totalorder %s19, 3
      %p113 = por %p111, %p112
      %p114 = scmp.ne.s32.totalorder %s103, %s104
      %p115 = scmp.eq.s32.totalorder %s19, 0
      %p116 = por %p114, %p115
      %p117 = scmp.ne.s32.totalorder %s103, %s104
      %p118 = scmp.eq.s32.totalorder %s20, 3
      %p119 = por %p117, %p118
      %p121 = scmp.ne.s32.totalorder %s104, %s120
      %p122 = scmp.eq.s32.totalorder %s20, 0
      %p123 = por %p121, %p122
      %s125 = sadd.s32 %s124, 1
      %p128 = scmp.eq.s32.totalorder %s14, 3
      %p129 = scmp.ne.s32.totalorder %s124, %s126
      %p130 = scmp.eq.s32.totalorder %s14, 0
      %p131 = por %p129, %p130
      %p132 = scmp.ne.s32.totalorder %s124, %s126
      %p133 = scmp.eq.s32.totalorder %s19, 3
      %p134 = por %p132, %p133
      %p135 = scmp.ne.s32.totalorder %s126, %s127
      %p136 = scmp.eq.s32.totalorder %s19, 0
      %p137 = por %p135, %p136
      %p138 = scmp.ne.s32.totalorder %s126, %s127
      %p139 = scmp.eq.s32.totalorder %s20, 3
      %p140 = por %p138, %p139
      %p142 = scmp.ne.s32.totalorder %s127, %s141
      %p143 = scmp.eq.s32.totalorder %s20, 0
      %p144 = por %p142, %p143
      %s146 = sadd.s32 %s145, 1
      %p149 = scmp.eq.s32.totalorder %s14, 3
      %p150 = scmp.ne.s32.totalorder %s145, %s147
      %p151 = scmp.eq.s32.totalorder %s14, 0
      %p152 = por %p150, %p151
      %p153 = scmp.ne.s32.totalorder %s145, %s147
      %p154 = scmp.eq.s32.totalorder %s19, 3
      %p155 = por %p153, %p154
      %p156 = scmp.ne.s32.totalorder %s147, %s148
      %p157 = scmp.eq.s32.totalorder %s19, 0
      %p158 = por %p156, %p157
      %p159 = scmp.ne.s32.totalorder %s147, %s148
      %p160 = scmp.eq.s32.totalorder %s20, 3
      %p161 = por %p159, %p160
      %p163 = scmp.ne.s32.totalorder %s148, %s162
      %p164 = scmp.eq.s32.totalorder %s20, 0
      %p165 = por %p163, %p164
      %s166 = ssub.s32 %s21, %s33
      %p167 = scmp.eq.s32.totalorder %s166, 0
      %s169 = sadd.s32 %s168, 1
      %s170 = scalar_select %p167, %s168, %s169
      %p173 = pneg %p167
      %p174 = scmp.eq.s32.totalorder %s14, 3
      %p175 = por %p173, %p174
      %p176 = scmp.ne.s32.totalorder %s168, %s171
      %p177 = scmp.eq.s32.totalorder %s14, 0
      %p178 = por %p176, %p177
      %p179 = scmp.ne.s32.totalorder %s168, %s171
      %p180 = scmp.eq.s32.totalorder %s19, 3
      %p181 = por %p179, %p180
      %p182 = scmp.ne.s32.totalorder %s171, %s172
      %p183 = scmp.eq.s32.totalorder %s19, 0
      %p184 = por %p182, %p183
      %p185 = scmp.ne.s32.totalorder %s171, %s172
      %p186 = scmp.eq.s32.totalorder %s20, 3
      %p187 = por %p185, %p186
      %p189 = scmp.ne.s32.totalorder %s172, %s188
      %p190 = scmp.eq.s32.totalorder %s20, 0
      %p191 = por %p189, %p190
      %p192 = scmp.le.s32.totalorder 1, %s14
      %p193 = scmp.lt.s32.totalorder %s14, 5
      %p194 = pnand %p192, %p193
      %p195 = pneg %p194
      // Predicated region
      $region9: #{targeted_loss_forward.1} parent=5 // pred_check
        _
      $region10: #{targeted_loss_forward.1} parent=5 // pred_check_branch
        %197 = sbr.rel (%p194) target = $region12
      $region11: #{targeted_loss_forward.1} parent=5 // pred_region
        %s198 = ssub.s32 %s14, 1
        // Predicated region
        $region13: #{targeted_loss_forward.1} parent=11 // pred_check
          %p199 = pneg %p137
        $region14: #{targeted_loss_forward.1} parent=11 // pred_check_branch
          %201 = sbr.rel (%p199) target = $region16
        $region15: #{targeted_loss_forward.1} parent=11 // pred_region
          _
        $region16: #{targeted_loss_forward.1} parent=11 // pred_fallthru
          _
        // Predicated region
        $region17: #{targeted_loss_forward.1} parent=11 // pred_check
          %p202 = pneg %p158
        $region18: #{targeted_loss_forward.1} parent=11 // pred_check_branch
          %204 = sbr.rel (%p202) target = $region20
        $region19: #{targeted_loss_forward.1} parent=11 // pred_region
          %206 = vsyncadd [#allocation5], 0
          %s208 = sshll.u32 %s5, 4
          %s209 = int_to_ptr.vmem [resolvable:$true] %s208
          %211 = dma.vmem_to_smem %s209, 16, [#allocation4], [#allocation5]
        $region20: #{targeted_loss_forward.1} parent=11 // pred_fallthru
          _
      $region12: #{targeted_loss_forward.1} parent=5 // pred_fallthru
        _
      %p212 = scmp.lt.s32.totalorder %s14, 4
      // Predicated region
      $region21: #{targeted_loss_forward.1} parent=5 // pred_check
        %p213 = pneg %p212
      $region22: #{targeted_loss_forward.1} parent=5 // pred_check_branch
        %215 = sbr.rel (%p213) target = $region24
      $region23: #{targeted_loss_forward.1} parent=5 // pred_region
        // Predicated region
        $region25: #{targeted_loss_forward.1} parent=23 // pred_check
          %p216 = pneg %p50
        $region26: #{targeted_loss_forward.1} parent=23 // pred_check_branch
          %218 = sbr.rel (%p216) target = $region28
        $region27: #{targeted_loss_forward.1} parent=23 // pred_region
          %s219 = smul.u32 %s21, 2
          %s220 = sadd.s32 %s219, %s22
          %p221 = scmp.lt.s32.totalorder %s220, 3
          %s222 = scalar_select %p221, %s220, 3
          %s223 = smul.addr %s222, 8
          %s224 = scalar_lea.vmem %s1, %s223
          %s225 = smul.u32 %s21, 2
          %s226 = sadd.s32 %s225, %s22
        $region28: #{targeted_loss_forward.1} parent=23 // pred_fallthru
          _
        // Predicated region
        $region29: #{targeted_loss_forward.1} parent=23 // pred_check
          %p227 = pneg %p80
        $region30: #{targeted_loss_forward.1} parent=23 // pred_check_branch
          %229 = sbr.rel (%p227) target = $region32
        $region31: #{targeted_loss_forward.1} parent=23 // pred_region
          %s230 = smul.u32 %s21, 2
          %s231 = sadd.s32 %s230, %s22
          %p232 = scmp.lt.s32.totalorder %s231, 3
          %s233 = scalar_select %p232, %s231, 3
          %s234 = smul.addr %s233, 8
          %s235 = scalar_lea.vmem %s2, %s234
          %s236 = smul.u32 %s21, 2
          %s237 = sadd.s32 %s236, %s22
        $region32: #{targeted_loss_forward.1} parent=23 // pred_fallthru
          _
        // Predicated region
        $region33: #{targeted_loss_forward.1} parent=23 // pred_check
          %p238 = pneg %p110
        $region34: #{targeted_loss_forward.1} parent=23 // pred_check_branch
          %240 = sbr.rel (%p238) target = $region36
        $region35: #{targeted_loss_forward.1} parent=23 // pred_region
          %s241 = smul.u32 %s21, 2
          %s242 = sadd.s32 %s241, %s22
          %p243 = scmp.lt.s32.totalorder %s242, 3
          %s244 = scalar_select %p243, %s242, 3
          %s245 = scalar_lea.vmem %s3, %s244
          %s246 = smul.u32 %s21, 2
          %s247 = sadd.s32 %s246, %s22
        $region36: #{targeted_loss_forward.1} parent=23 // pred_fallthru
          _
      $region24: #{targeted_loss_forward.1} parent=5 // pred_fallthru
        _
      %p248 = scmp.le.s32.totalorder 1, %s14
      %p249 = scmp.lt.s32.totalorder %s14, 5
      %p250 = pnand %p248, %p249
      %p251 = pneg %p250
      // Predicated region
      $region37: #{targeted_loss_forward.1} parent=5 // pred_check
        _
      $region38: #{targeted_loss_forward.1} parent=5 // pred_check_branch
        %253 = sbr.rel (%p250) target = $region40
      $region39: #{targeted_loss_forward.1} parent=5 // pred_region
        %s254 = ssub.s32 %s14, 1
        // Predicated region
        $region41: #{targeted_loss_forward.1} parent=39 // pred_check
          %p255 = pneg %p158
        $region42: #{targeted_loss_forward.1} parent=39 // pred_check_branch
          %257 = sbr.rel (%p255) target = $region44
        $region43: #{targeted_loss_forward.1} parent=39 // pred_region
          %259 = dma.done [#allocation5], 16
        $region44: #{targeted_loss_forward.1} parent=39 // pred_fallthru
          _
        %260 = sfence
        %s261 = smul.u32 %s23, 2
        %s262 = sadd.s32 %s261, %s24
        %p263 = scmp.lt.s32.totalorder %s262, 3
        %s264 = scalar_select %p263, %s262, 3
        %s265 = smul.addr %s264, 8
        %s266 = scalar_lea.vmem %s1, %s265
        %p267 = pneg %p56
        %p268 = pneg %p53
        %s269 = smul.u32 %s23, 2
        %s270 = sadd.s32 %s269, %s24
        %p271 = scmp.lt.s32.totalorder %s270, 3
        %s272 = scalar_select %p271, %s270, 3
        %s273 = smul.addr %s272, 8
        %s274 = scalar_lea.vmem %s2, %s273
        %p275 = pneg %p86
        %p276 = pneg %p83
        %s277 = smul.u32 %s23, 2
        %s278 = sadd.s32 %s277, %s24
        %p279 = scmp.lt.s32.totalorder %s278, 3
        %s280 = scalar_select %p279, %s278, 3
        %s281 = scalar_lea.vmem %s3, %s280
        %p282 = pneg %p116
        %p283 = pneg %p113
        %p284 = pneg %p137
        %p285 = pneg %p134
        %p286 = pneg %p158
        %p287 = pneg %p155
        %p288 = pneg %p184
        %p289 = pneg %p181
        %p290 = scmp.lt.s32.totalorder %s23, 1
        %s291 = scalar_select %p290, %s23, 1
        %s292 = scalar_lea.vmem %s6, %s291
        %s293 = smul.u32 %s23, 2
        %s294 = sadd.s32 %s293, %s24
        %p295 = scmp.lt.s32.totalorder %s294, 3
        %s296 = scalar_select %p295, %s294, 3
        %s297 = smul.addr %s296, 8
        %s298 = scalar_lea.vmem %s1, %s297
        %s299 = smul.u32 %s23, 2
        %s300 = sadd.s32 %s299, %s24
        %s301 = smul.u32 %s23, 2
        %s302 = sadd.s32 %s301, %s24
        %p303 = scmp.lt.s32.totalorder %s302, 3
        %s304 = scalar_select %p303, %s302, 3
        %s305 = smul.addr %s304, 8
        %s306 = scalar_lea.vmem %s2, %s305
        %s307 = smul.u32 %s23, 2
        %s308 = sadd.s32 %s307, %s24
        %s309 = smul.u32 %s23, 2
        %s310 = sadd.s32 %s309, %s24
        %p311 = scmp.lt.s32.totalorder %s310, 3
        %s312 = scalar_select %p311, %s310, 3
        %s313 = scalar_lea.vmem %s3, %s312
        %s314 = smul.u32 %s23, 2
        %s315 = sadd.s32 %s314, %s24
        %p316 = scmp.lt.s32.totalorder %s23, 1
        %s317 = scalar_select %p316, %s23, 1
        %s318 = scalar_lea.vmem %s6, %s317
        %p319 = scmp.eq.s32.totalorder %s24, 0
        // Predicated region
        $region45: #{targeted_loss_forward.1} parent=39 // pred_check
          %p320 = pneg %p319
        $region46: #{targeted_loss_forward.1} parent=39 // pred_check_branch
          %322 = sbr.rel (%p320) target = $region48
        $region47: #{targeted_loss_forward.1} parent=39 // pred_region
          %vm323 = vcmask 0
          %324 = vst.msk [vmem:[%s318] sm:$0x1] %vm323, 0.0
        $region48: #{targeted_loss_forward.1} parent=39 // pred_fallthru
          _
        %v325 = vld [vmem:[%s298] sm:$0xff]
        %v326 = vld [vmem:[%s306] sm:$0xff]
        %v327 = vld [vmem:[%s313] sm:$0x1]
        %v328 = vmul.f32 %v326, %v326
        %v330 = vrot.slane %v328, 1
        %v332 = vadd.f32 %v328, %v330
        %v333 = vrsqrt.pop %v332
        %v334 = vmul.f32 %v333, %v332
        %v335 = vmul.f32 %v334, %v333
        %v336 = vmul.f32 0.5, %v335
        %v337 = vsub.f32 1.5, %v336
        %v338 = vmul.f32 %v333, %v337
        %v339 = vmul.f32 %v332, %v338
        %vm340 = vcmp.eq.f32.partialorder %v332, inf
        %v341 = vsel %vm340, %v332, %v339
        %vm342 = vcmp.eq.f32.partialorder %v332, 0.0
        %v343 = vand.u32 %v332, 2147483648
        %v344 = vsel %vm342, %v343, %v341
        %v346 = vrot.slane %v344, 4
        %v348 = vmul.f32 %v325, %v346
        %v349 = vadd.f32 %v348, %v326
        %v350 = vrot.slane %v344, 3
        %v352 = vmul.f32 %v325, %v350
        %v353 = vadd.f32 %v352, %v326
        %v355 = vrot.slane %v326, 1
        %v357 = vmul.f32 %v325, %v355
        %v358 = vadd.f32 %v357, %v326
        %v359 = vmul.f32 %v325, 1.442695
        %v360 = vpow.pop %v359
        %v361 = vmul.f32 %v360, %v326
        %v362 = vadd.f32 %v325, %v326
        %s363 = sld [smem:[#allocation4]]
        %s364 = sld [smem:[#allocation4 + $0x1]]
        %s365 = sld [smem:[#allocation4 + $0x2]]
        %s366 = sld [smem:[#allocation4 + $0x3]]
        %s367 = sld [smem:[#allocation4 + $0x4]]
        %s368 = sld [smem:[#allocation4 + $0x5]]
        %s369 = sld [smem:[#allocation4 + $0x6]]
        %s370 = sld [smem:[#allocation4 + $0x7]]
        %v371 = vand.u32 2147483647, %v362
        %vm372 = vcmp.le.f32.partialorder %v371, 0.7853982
        %vm373 = vcmp.lt.s32.totalorder %v362, 0
        %v374 = vand.u32 %v362, 2139095040
        %v375 = vshrl.u32 %v374, 23
        %v376 = vsub.s32 %v375, 127
        %v377 = vand.u32 2147483647, %v362
        %v378 = vand.u32 %v377, 8388607
        %v379 = vor.u32 %v378, 8388608
        %v380 = vsub.s32 0, %v379
        %v381 = vadd.s32 %v376, 1
        %vm382 = vcmp.gt.s32.totalorder %v381, 0
        %v383 = vsel %vm382, %v381, 0
        %v384 = vshrl.u32 %v383, 5
        %v385 = vand.u32 %v383, 31
        %v386 = vsub.s32 32, %v385
        %v387 = vshrl.u32 683565275, %v386
        %v388 = vshll.u32 683565275, %v385
        %v389 = vshrl.u32 2475754826, %v386
        %v390 = vor.u32 %v388, %v389
        %v391 = vshll.u32 2475754826, %v385
        %v392 = vshrl.u32 2131351028, %v386
        %v393 = vor.u32 %v391, %v392
        %v394 = vshll.u32 2131351028, %v385
        %v395 = vshrl.u32 2102212464, %v386
        %v396 = vor.u32 %v394, %v395
        %v397 = vshll.u32 2102212464, %v385
        %v398 = vshrl.u32 920167782, %v386
        %v399 = vor.u32 %v397, %v398
        %v400 = vshll.u32 920167782, %v385
        %v401 = vshrl.u32 1326507024, %v386
        %v402 = vor.u32 %v400, %v401
        %vm403 = vcmp.lt.s32.totalorder %v384, 1
        %vm404 = vcmp.lt.s32.totalorder %v384, 2
        %vm405 = vcmp.lt.s32.totalorder %v384, 3
        %vm406 = vcmp.lt.s32.totalorder %v384, 4
        %v407 = vsel %vm403, %v387, %v390
        %v408 = vsel %vm406, %v396, 2102212464
        %v409 = vsel %vm405, %v393, %v408
        %v410 = vsel %vm404, %v407, %v409
        %v411 = vsel %vm403, %v390, %v393
        %v412 = vsel %vm406, %v399, 920167782
        %v413 = vsel %vm405, %v396, %v412
        %v414 = vsel %vm404, %v411, %v413
        %v415 = vsel %vm403, %v393, %v396
        %v416 = vsel %vm406, %v402, 1326507024
        %v417 = vsel %vm405, %v399, %v416
        %v418 = vsel %vm404, %v415, %v417
        %v419 = vshll.u32 %v379, 8
        %v420 = vand.u32 %v419, 65535
        %v421 = vshrl.u32 %v419, 16
        %v422 = vand.u32 %v418, 65535
        %v423 = vshrl.u32 %v418, 16
        %v424 = vmul.u32 %v420, %v422
        %v425 = vmul.u32 %v420, %v423
        %v426 = vmul.u32 %v421, %v422
        %v427 = vmul.u32 %v421, %v423
        %v428 = vshll.u32 %v425, 16
        %v429 = vshrl.u32 %v425, 16
        %v430 = vshll.u32 %v426, 16
        %v431 = vshrl.u32 %v426, 16
        %vm432 = vc.u32 %v424, %v428
        %v433 = vsel %vm432, 1, 0
        %v434 = vadd.s32 %v424, %v428
        %v435 = vadd.s32 %v427, %v433
        %vm436 = vc.u32 %v434, %v430
        %v437 = vsel %vm436, 1, 0
        %v438 = vadd.s32 %v434, %v430
        %v439 = vadd.s32 %v435, %v437
        %v440 = vadd.s32 %v439, %v429
        %v441 = vadd.s32 %v440, %v431
        %v442 = vand.u32 %v419, 65535
        %v443 = vshrl.u32 %v419, 16
        %v444 = vand.u32 %v414, 65535
        %v445 = vshrl.u32 %v414, 16
        %v446 = vmul.u32 %v442, %v444
        %v447 = vmul.u32 %v442, %v445
        %v448 = vmul.u32 %v443, %v444
        %v449 = vmul.u32 %v443, %v445
        %v450 = vshll.u32 %v447, 16
        %v451 = vshrl.u32 %v447, 16
        %v452 = vshll.u32 %v448, 16
        %v453 = vshrl.u32 %v448, 16
        %vm454 = vc.u32 %v446, %v450
        %v455 = vsel %vm454, 1, 0
        %v456 = vadd.s32 %v446, %v450
        %v457 = vadd.s32 %v449, %v455
        %vm458 = vc.u32 %v456, %v452
        %v459 = vsel %vm458, 1, 0
        %v460 = vadd.s32 %v456, %v452
        %v461 = vadd.s32 %v457, %v459
        %v462 = vadd.s32 %v461, %v451
        %v463 = vadd.s32 %v462, %v453
        %v464 = vmul.u32 %v419, %v410
        %v465 = vadd.s32 %v441, %v460
        %vm466 = vc.u32 %v441, %v460
        %v467 = vadd.s32 %v463, 1
        %v468 = vsel %vm466, %v467, %v463
        %v469 = vadd.s32 %v464, %v468
        %v470 = vadd.s32 %v469, 536870912
        %v471 = vshrl.u32 %v470, 30
        %v472 = vshll.u32 %v471, 30
        %v473 = vsub.s32 %v469, %v472
        %vm474 = vcmp.lt.s32.totalorder %v473, 0
        %v475 = vsub.s32 0, %v473
        %v476 = vsel %vm474, %v475, %v473
        %v477 = vclz %v476
        %v478 = vsub.s32 %v477, 2
        %vm479 = vcmp.gt.s32.totalorder 0, %v478
        %v480 = vsel %vm479, 0, %v478
        %v481 = vsub.s32 32, %v480
        %v482 = vshll.u32 %v473, %v480
        %v483 = vshrl.u32 %v465, %v481
        %v484 = vor.u32 %v482, %v483
        %v485 = vsub.s32 4294967266, %v480
        %v486 = vadd.s32 %v485, 127
        %v487 = vshll.u32 %v486, 23
        %v488 = vor.u32 4788187, %v487
        %v489 = vand.u32 2147483647, %v488
        %v491 = vcvt.s32.f32 %v484
        %v492 = vmul.f32 %v491, %v489
        %v493 = vxor.u32 %v492, 2147483648
        %v494 = vsel %vm373, %v493, %v492
        %v495 = vsub.s32 4, %v471
        %v496 = vsel %vm373, %v495, %v471
        %v497 = vsel %vm372, %v362, %v494
        %v498 = vsel %vm372, 0, %v496
        %v499 = vmul.f32 %v497, %v497
        %v500 = vmul.f32 %v499, -0.001358992
        %v501 = vadd.f32 %v500, 0.041655596
        %v502 = vmul.f32 %v499, %v501
        %v503 = vadd.f32 %v502, -0.4999988
        %v504 = vmul.f32 %v499, %v503
        %v505 = vadd.f32 1.0, %v504
        %v506 = vmul.f32 %v497, %v497
        %v507 = vmul.f32 %v506, -0.00019511016
        %v508 = vadd.f32 %v507, 0.008332121
        %v509 = vmul.f32 %v506, %v508
        %v510 = vadd.f32 %v509, -0.16666654
        %v511 = vmul.f32 %v506, %v510
        %v512 = vadd.f32 %v511, 1.0
        %v513 = vmul.f32 %v512, %v497
        %vm514 = vweird.f32 %v362
        %v515 = vand.u32 %v498, 3
        %vm516 = vcmp.lt.s32.totalorder %v515, 2
        %vm517 = vcmp.eq.s32.totalorder %v515, 0
        %v518 = vxor.u32 %v513, 2147483648
        %v519 = vsel %vm517, %v505, %v518
        %vm520 = vcmp.eq.s32.totalorder %v515, 2
        %v521 = vxor.u32 %v505, 2147483648
        %v522 = vsel %vm520, %v521, %v513
        %v523 = vsel %vm516, %v519, %v522
        %v524 = vsel %vm514, nan, %v523
        %v525 = vand.u32 2147483647, %v362
        %vm526 = vcmp.le.f32.partialorder %v525, 0.7853982
        %vm527 = vcmp.lt.s32.totalorder %v362, 0
        %v528 = vand.u32 %v362, 2139095040
        %v529 = vshrl.u32 %v528, 23
        %v530 = vsub.s32 %v529, 127
        %v531 = vand.u32 2147483647, %v362
        %v532 = vand.u32 %v531, 8388607
        %v533 = vor.u32 %v532, 8388608
        %v534 = vsub.s32 0, %v533
        %v535 = vadd.s32 %v530, 1
        %vm536 = vcmp.gt.s32.totalorder %v535, 0
        %v537 = vsel %vm536, %v535, 0
        %v538 = vshrl.u32 %v537, 5
        %v539 = vand.u32 %v537, 31
        %v540 = vsub.s32 32, %v539
        %v541 = vshrl.u32 683565275, %v540
        %v542 = vshll.u32 683565275, %v539
        %v543 = vshrl.u32 2475754826, %v540
        %v544 = vor.u32 %v542, %v543
        %v545 = vshll.u32 2475754826, %v539
        %v546 = vshrl.u32 2131351028, %v540
        %v547 = vor.u32 %v545, %v546
        %v548 = vshll.u32 2131351028, %v539
        %v549 = vshrl.u32 2102212464, %v540
        %v550 = vor.u32 %v548, %v549
        %v551 = vshll.u32 2102212464, %v539
        %v552 = vshrl.u32 920167782, %v540
        %v553 = vor.u32 %v551, %v552
        %v554 = vshll.u32 920167782, %v539
        %v555 = vshrl.u32 1326507024, %v540
        %v556 = vor.u32 %v554, %v555
        %vm557 = vcmp.lt.s32.totalorder %v538, 1
        %vm558 = vcmp.lt.s32.totalorder %v538, 2
        %vm559 = vcmp.lt.s32.totalorder %v538, 3
        %vm560 = vcmp.lt.s32.totalorder %v538, 4
        %v561 = vsel %vm557, %v541, %v544
        %v562 = vsel %vm560, %v550, 2102212464
        %v563 = vsel %vm559, %v547, %v562
        %v564 = vsel %vm558, %v561, %v563
        %v565 = vsel %vm557, %v544, %v547
        %v566 = vsel %vm560, %v553, 920167782
        %v567 = vsel %vm559, %v550, %v566
        %v568 = vsel %vm558, %v565, %v567
        %v569 = vsel %vm557, %v547, %v550
        %v570 = vsel %vm560, %v556, 1326507024
        %v571 = vsel %vm559, %v553, %v570
        %v572 = vsel %vm558, %v569, %v571
        %v573 = vshll.u32 %v533, 8
        %v574 = vand.u32 %v573, 65535
        %v575 = vshrl.u32 %v573, 16
        %v576 = vand.u32 %v572, 65535
        %v577 = vshrl.u32 %v572, 16
        %v578 = vmul.u32 %v574, %v576
        %v579 = vmul.u32 %v574, %v577
        %v580 = vmul.u32 %v575, %v576
        %v581 = vmul.u32 %v575, %v577
        %v582 = vshll.u32 %v579, 16
        %v583 = vshrl.u32 %v579, 16
        %v584 = vshll.u32 %v580, 16
        %v585 = vshrl.u32 %v580, 16
        %vm586 = vc.u32 %v578, %v582
        %v587 = vsel %vm586, 1, 0
        %v588 = vadd.s32 %v578, %v582
        %v589 = vadd.s32 %v581, %v587
        %vm590 = vc.u32 %v588, %v584
        %v591 = vsel %vm590, 1, 0
        %v592 = vadd.s32 %v588, %v584
        %v593 = vadd.s32 %v589, %v591
        %v594 = vadd.s32 %v593, %v583
        %v595 = vadd.s32 %v594, %v585
        %v596 = vand.u32 %v573, 65535
        %v597 = vshrl.u32 %v573, 16
        %v598 = vand.u32 %v568, 65535
        %v599 = vshrl.u32 %v568, 16
        %v600 = vmul.u32 %v596, %v598
        %v601 = vmul.u32 %v596, %v599
        %v602 = vmul.u32 %v597, %v598
        %v603 = vmul.u32 %v597, %v599
        %v604 = vshll.u32 %v601, 16
        %v605 = vshrl.u32 %v601, 16
        %v606 = vshll.u32 %v602, 16
        %v607 = vshrl.u32 %v602, 16
        %vm608 = vc.u32 %v600, %v604
        %v609 = vsel %vm608, 1, 0
        %v610 = vadd.s32 %v600, %v604
        %v611 = vadd.s32 %v603, %v609
        %vm612 = vc.u32 %v610, %v606
        %v613 = vsel %vm612, 1, 0
        %v614 = vadd.s32 %v610, %v606
        %v615 = vadd.s32 %v611, %v613
        %v616 = vadd.s32 %v615, %v605
        %v617 = vadd.s32 %v616, %v607
        %v618 = vmul.u32 %v573, %v564
        %v619 = vadd.s32 %v595, %v614
        %vm620 = vc.u32 %v595, %v614
        %v621 = vadd.s32 %v617, 1
        %v622 = vsel %vm620, %v621, %v617
        %v623 = vadd.s32 %v618, %v622
        %v624 = vadd.s32 %v623, 536870912
        %v625 = vshrl.u32 %v624, 30
        %v626 = vshll.u32 %v625, 30
        %v627 = vsub.s32 %v623, %v626
        %vm628 = vcmp.lt.s32.totalorder %v627, 0
        %v629 = vsub.s32 0, %v627
        %v630 = vsel %vm628, %v629, %v627
        %v631 = vclz %v630
        %v632 = vsub.s32 %v631, 2
        %vm633 = vcmp.gt.s32.totalorder 0, %v632
        %v634 = vsel %vm633, 0, %v632
        %v635 = vsub.s32 32, %v634
        %v636 = vshll.u32 %v627, %v634
        %v637 = vshrl.u32 %v619, %v635
        %v638 = vor.u32 %v636, %v637
        %v639 = vsub.s32 4294967266, %v634
        %v640 = vadd.s32 %v639, 127
        %v641 = vshll.u32 %v640, 23
        %v642 = vor.u32 4788187, %v641
        %v643 = vand.u32 2147483647, %v642
        %v645 = vcvt.s32.f32 %v638
        %v646 = vmul.f32 %v645, %v643
        %v647 = vxor.u32 %v646, 2147483648
        %v648 = vsel %vm527, %v647, %v646
        %v649 = vsub.s32 4, %v625
        %v650 = vsel %vm527, %v649, %v625
        %v651 = vsel %vm526, %v362, %v648
        %v652 = vsel %vm526, 0, %v650
        %v653 = vmul.f32 %v651, %v651
        %v654 = vmul.f32 %v653, -0.001358992
        %v655 = vadd.f32 %v654, 0.041655596
        %v656 = vmul.f32 %v653, %v655
        %v657 = vadd.f32 %v656, -0.4999988
        %v658 = vmul.f32 %v653, %v657
        %v659 = vadd.f32 1.0, %v658
        %v660 = vmul.f32 %v651, %v651
        %v661 = vmul.f32 %v660, -0.00019511016
        %v662 = vadd.f32 %v661, 0.008332121
        %v663 = vmul.f32 %v660, %v662
        %v664 = vadd.f32 %v663, -0.16666654
        %v665 = vmul.f32 %v660, %v664
        %v666 = vadd.f32 %v665, 1.0
        %v667 = vmul.f32 %v666, %v651
        %vm668 = vweird.f32 %v362
        %v669 = vadd.s32 %v652, 3
        %v670 = vand.u32 %v669, 3
        %vm671 = vcmp.lt.s32.totalorder %v670, 2
        %vm672 = vcmp.eq.s32.totalorder %v670, 0
        %v673 = vxor.u32 %v667, 2147483648
        %v674 = vsel %vm672, %v659, %v673
        %vm675 = vcmp.eq.s32.totalorder %v670, 2
        %v676 = vxor.u32 %v659, 2147483648
        %v677 = vsel %vm675, %v676, %v667
        %v678 = vsel %vm671, %v674, %v677
        %v679 = vsel %vm668, nan, %v678
        %v680 = vstv %s363
        %v681 = vmul.f32 %v680, %v349
        %v682 = vstv %s364
        %v683 = vmul.f32 %v682, %v353
        %v685 = vrot.slane %v683, 1
        %v687 = vadd.f32 %v681, %v685
        %v688 = vstv %s365
        %v689 = vmul.f32 %v688, %v358
        %v691 = vrot.slane %v689, 2
        %v693 = vadd.f32 %v687, %v691
        %v694 = vstv %s366
        %v695 = vadd.f32 %v693, %v694
        %v696 = vstv %s367
        %v697 = vmul.f32 %v696, %v349
        %v698 = vstv %s368
        %v699 = vmul.f32 %v698, %v353
        %v701 = vrot.slane %v699, 1
        %v703 = vadd.f32 %v697, %v701
        %v704 = vstv %s369
        %v705 = vmul.f32 %v704, %v358
        %v707 = vrot.slane %v705, 2
        %v709 = vadd.f32 %v703, %v707
        %v710 = vstv %s370
        %v711 = vadd.f32 %v709, %v710
        %v712 = vmul.f32 %v680, %v524
        %v713 = vmul.f32 %v682, %v679
        %v714 = vadd.f32 %v712, %v713
        %v715 = vand.u32 2147483647, %v714
        %v717 = vrot.slane %v361, 7
        %v719 = vmul.f32 %v715, %v717
        %v720 = vmul.f32 %v682, %v524
        %v721 = vmul.f32 %v680, %v679
        %v722 = vsub.f32 %v720, %v721
        %v723 = vand.u32 2147483647, %v722
        %v724 = vrot.slane %v361, 6
        %v726 = vmul.f32 %v723, %v724
        %v727 = vadd.f32 %v719, %v726
        %s728 = sand.u32 2147483647, %s365
        %v729 = vstv %s728
        %v730 = vmul.f32 %v729, %v361
        %v732 = vrot.slane %v730, 5
        %v734 = vadd.f32 %v727, %v732
        %v735 = vmul.f32 %v734, 0.5
        %v736 = vmul.f32 %v696, %v524
        %v737 = vmul.f32 %v698, %v679
        %v738 = vadd.f32 %v736, %v737
        %v739 = vand.u32 2147483647, %v738
        %v740 = vmul.f32 %v739, %v717
        %v741 = vmul.f32 %v698, %v524
        %v742 = vmul.f32 %v696, %v679
        %v743 = vsub.f32 %v741, %v742
        %v744 = vand.u32 2147483647, %v743
        %v745 = vmul.f32 %v744, %v724
        %v746 = vadd.f32 %v740, %v745
        %s747 = sand.u32 2147483647, %s369
        %v748 = vstv %s747
        %v749 = vmul.f32 %v748, %v361
        %v751 = vrot.slane %v749, 5
        %v753 = vadd.f32 %v746, %v751
        %v754 = vmul.f32 %v753, 0.5
        %v756 = vrot.slane %v735, 6
        %v758 = vsub.f32 %v695, %v756
        %v759 = vadd.f32 %v695, %v756
        %v761 = vrot.slane %v754, 6
        %v763 = vsub.f32 %v711, %v761
        %v764 = vadd.f32 %v711, %v761
        %v765 = vmul.f32 %v735, 4.0
        %v766 = vmul.f32 %v765, %v754
        %s767 = smul.u32 %s23, 2
        %s768 = sadd.s32 %s767, %s24
        %s769 = smul.u32 %s768, 128
        %v770 = vlaneseq
        %v771 = vand.u32 %v770, 127
        %v772 = vstv %s769
        %v773 = vadd.s32 %v771, %v772
        %s774 = sld [smem:[#allocation3]]
        %v775 = vstv %s774
        %vm776 = vcmp.lt.s32.totalorder %v773, %v775
        %v777 = vsel %vm776, 1, 0
        %v778 = vcvt.s32.f32 %v777
        %vm779 = vcmp.gt.f32.partialorder %v327, -2.1972246
        %v780 = vsel %vm779, 1, 0
        %v781 = vcvt.s32.f32 %v780
        %v782 = vmax.f32 %v327, 0.0
        %v783 = vand.u32 2147483647, %v327
        %v784 = vsub.f32 0.0, %v783
        %v785 = vmul.f32 %v784, 1.442695
        %v786 = vpow.pop %v785
        %v787 = vadd.f32 %v786, 1.0
        %v788 = vlog2.pop %v787
        %v789 = vmul.f32 %v788, 0.6931472
        %v790 = vadd.f32 %v782, %v789
        %v791 = vmul.f32 %v781, %v778
        %v792 = vsub.f32 0.0, %v790
        %v793 = vmul.f32 %v791, %v792
        %v794 = vld [vmem:[%s4] sm:$0xff]
        %v795 = vperm.slane %v759, 0
        %797 = vset.pattern.permute.xlu0 2
        %798 = vperm.xlu0 %797, %v794
        %v799 = vpop.permute.xlu0 %798
        %v801 = vmin.f32 %v795, %v799
        %v802 = vperm.slane %v758, 0
        %803 = vset.pattern.permute.xlu0 0
        %804 = vperm.xlu0 %803, %v794
        %v805 = vpop.permute.xlu0 %804
        %v807 = vmax.f32 %v802, %v805
        %v808 = vsub.f32 %v801, %v807
        %v809 = vmax.f32 %v808, 0.0
        %v810 = vperm.slane %v764, 0
        %811 = vset.pattern.permute.xlu0 3
        %812 = vperm.xlu0 %811, %v794
        %v813 = vpop.permute.xlu0 %812
        %v815 = vmin.f32 %v810, %v813
        %v816 = vperm.slane %v763, 0
        %817 = vset.pattern.permute.xlu0 1
        %818 = vperm.xlu0 %817, %v794
        %v819 = vpop.permute.xlu0 %818
        %v821 = vmax.f32 %v816, %v819
        %v822 = vsub.f32 %v815, %v821
        %v823 = vmax.f32 %v822, 0.0
        %v824 = vmul.f32 %v809, %v823
        %v825 = vperm.slane %v766, 6
        %826 = vset.pattern.permute.xlu0 4
        %827 = vperm.xlu0 %826, %v794
        %v828 = vpop.permute.xlu0 %827
        %v830 = vadd.f32 %v825, %v828
        %v831 = vsub.f32 %v830, %v824
        %v832 = vadd.f32 %v831, 1e-06
        %v833 = vrcp.pop %v832
        %v834 = vmul.f32 %v824, %v833
        %835 = vset.pattern.permute.xlu0 5
        %836 = vperm.xlu0 %835, %v794
        %v837 = vpop.permute.xlu0 %836
        %v840 = vperm.slane %v793, 0
        %v842 = vmul.f32 %v837, %v840
        %v843 = vmul.f32 %v842, %v834
        %v844 = vld [vmem:[%s318] sm:$0x1]
        %845 = vadd.xlane.f32.xlu0 %v843
        %v846 = vpop.xlane.xlu0 %845
        %v847 = vrot.slane %v846, 4
        %v848 = vadd.f32 %v846, %v847
        %v849 = vrot.slane %v848, 2
        %v850 = vadd.f32 %v848, %v849
        %v851 = vrot.slane %v850, 1
        %v852 = vadd.f32 %v850, %v851
        %s853 = vtos %v852
        %v854 = vstv %s853
        %v855 = vadd.f32 %v844, %v854
        %vm856 = vcmask 0
        %857 = vst.msk [vmem:[%s318] sm:$0x1] %vm856, %v855
        %p858 = scmp.lt.s32.totalorder %s23, 1
        %s859 = scalar_select %p858, %s23, 1
        %s860 = scalar_lea.vmem %s6, %s859
        // Predicated region
        $region49: #{targeted_loss_forward.1} parent=39 // pred_check
          %p861 = pneg %p181
        $region50: #{targeted_loss_forward.1} parent=39 // pred_check_branch
          %863 = sbr.rel (%p861) target = $region52
        $region51: #{targeted_loss_forward.1} parent=39 // pred_region
          _
        $region52: #{targeted_loss_forward.1} parent=39 // pred_fallthru
          _
      $region40: #{targeted_loss_forward.1} parent=5 // pred_fallthru
        _
      %p864 = scmp.le.s32.totalorder 2, %s14
      // Predicated region
      $region53: #{targeted_loss_forward.1} parent=5 // pred_check
        %p865 = pneg %p864
      $region54: #{targeted_loss_forward.1} parent=5 // pred_check_branch
        %867 = sbr.rel (%p865) target = $region56
      $region55: #{targeted_loss_forward.1} parent=5 // pred_region
        %s868 = ssub.s32 %s14, 2
        // Predicated region
        $region57: #{targeted_loss_forward.1} parent=55 // pred_check
          %p869 = pneg %p187
        $region58: #{targeted_loss_forward.1} parent=55 // pred_check_branch
          %871 = sbr.rel (%p869) target = $region60
        $region59: #{targeted_loss_forward.1} parent=55 // pred_region
          %p872 = scmp.lt.s32.totalorder %s25, 1
          %s873 = scalar_select %p872, %s25, 1
          %s874 = scalar_lea.vmem %s6, %s873
        $region60: #{targeted_loss_forward.1} parent=55 // pred_fallthru
          _
      $region56: #{targeted_loss_forward.1} parent=5 // pred_fallthru
        _
    $region6: #{targeted_loss_forward.1} parent=1 // loop_footer
      %s18 = sadd.s32 1, %s14
    $region7: #{targeted_loss_forward.1} parent=1 // loop_footer_branch
      %13 = sbr.rel target = $region3
    $region8: #{targeted_loss_forward.1} parent=1 // loop_exit
      _
    %875 = vsyncpa [#allocation5], 1
    %s876 = scalar_lea.sflag [#allocation5], 1
    %877 = vsyncpa %s876, 1

</llo_original>
